<compile_context>
chip_gen: v6e
topology: v6e:2x2x1
jax: 0.10.0
libtpu: 0.0.40
codegen_flags: <defaults>
</compile_context>

<pallas_src>
import functools

import jax
import jax.numpy as jnp
from jax.experimental import pallas as pl
from jax.experimental.pallas import tpu as pltpu


# ---------------------------------------------------------------------------
# Kernels (transposed layout: rows = features on sublanes, cols = nodes on lanes)
# ---------------------------------------------------------------------------
def _sage_relu_kernel(a_ref, xk_ref, xi_ref, invdeg_ref,
                      wl_ref, wr_ref, b_ref, o_ref, acc_ref):
    """One SAGEConv + ReLU.  grid = (i: node-row tiles, k: A-column reduction).

    acc (F_in, tile_i) accumulates sum-aggregation^T = X^T @ A^T for row tile i
    (A^T stored as an int8 multiplicity mask, upcast in-kernel).  Finalize:
      o = relu(W_l @ (acc * 1/deg) + W_r @ x_root + b)
    """
    k = pl.program_id(1)

    @pl.when(k == 0)
    def _init():
        acc_ref[...] = jnp.zeros_like(acc_ref)

    # int8 -> f32 -> bf16 upcast on the VPU; hides under the (HBM-bound) A DMA.
    a = a_ref[...].astype(jnp.float32).astype(xk_ref.dtype)
    acc_ref[...] += jnp.dot(xk_ref[...], a, preferred_element_type=jnp.float32)

    @pl.when(k == pl.num_programs(1) - 1)
    def _finalize():
        # Exact f32 mean normalisation: (F_in, ti) * (1, ti) broadcast.
        agg = acc_ref[...] * invdeg_ref[...]
        h = jnp.dot(wl_ref[...], agg.astype(wl_ref.dtype),
                    preferred_element_type=jnp.float32)
        h += jnp.dot(wr_ref[...], xi_ref[...],
                     preferred_element_type=jnp.float32)
        h = jnp.maximum(h + b_ref[...], 0.0)           # bias + ReLU in f32
        o_ref[...] = h.astype(o_ref.dtype)


def _sage_relu_linear_kernel(a_ref, xk_ref, xi_ref, invdeg_ref,
                             wl_ref, wr_ref, b_ref, wlin_ref, blin_ref,
                             o_ref, acc_ref):
    """Second SAGEConv + ReLU with the final Linear fused into the finalize."""
    k = pl.program_id(1)

    @pl.when(k == 0)
    def _init():
        acc_ref[...] = jnp.zeros_like(acc_ref)

    a = a_ref[...].astype(jnp.float32).astype(xk_ref.dtype)
    acc_ref[...] += jnp.dot(xk_ref[...], a, preferred_element_type=jnp.float32)

    @pl.when(k == pl.num_programs(1) - 1)
    def _finalize():
        agg = acc_ref[...] * invdeg_ref[...]
        h = jnp.dot(wl_ref[...], agg.astype(wl_ref.dtype),
                    preferred_element_type=jnp.float32)
        h += jnp.dot(wr_ref[...], xi_ref[...],
                     preferred_element_type=jnp.float32)
        h = jnp.maximum(h + b_ref[...], 0.0)           # ReLU in f32
        out = jnp.dot(wlin_ref[...], h.astype(wlin_ref.dtype),
                      preferred_element_type=jnp.float32) + blin_ref[...]
        o_ref[...] = out.astype(o_ref.dtype)


# ---------------------------------------------------------------------------
# pallas_call driver for one layer
# ---------------------------------------------------------------------------
def _run_layer(kernel, a_t, x_t, inv_deg, small_operands,
               out_rows, out_dtype, tile_i, tile_k):
    n_pad = a_t.shape[0]
    f_in = x_t.shape[0]
    grid = (n_pad // tile_i, n_pad // tile_k)

    in_specs = [
        # A^T int8 tile: block rows = A-column block k, block cols = row tile i
        pl.BlockSpec((tile_k, tile_i), lambda i, k: (k, i)),
        # X^T column block k (aggregation operand)
        pl.BlockSpec((f_in, tile_k), lambda i, k: (0, k)),
        # X^T column block i (root / self operand)
        pl.BlockSpec((f_in, tile_i), lambda i, k: (0, i)),
        # 1/deg_in for row tile i (f32, exact mean normalisation)
        pl.BlockSpec((1, tile_i), lambda i, k: (0, i)),
    ]
    # Tiny weight / bias operands: full-array blocks, fetched once and resident.
    in_specs += [pl.BlockSpec(w.shape, lambda i, k: (0, 0))
                 for w in small_operands]

    return pl.pallas_call(
        kernel,
        out_shape=jax.ShapeDtypeStruct((out_rows, n_pad), out_dtype),
        grid=grid,
        in_specs=in_specs,
        out_specs=pl.BlockSpec((out_rows, tile_i), lambda i, k: (0, i)),
        scratch_shapes=[pltpu.VMEM((f_in, tile_i), jnp.float32)],
        compiler_params=pltpu.CompilerParams(
            dimension_semantics=("parallel", "arbitrary"),
            vmem_limit_bytes=32 * 1024 * 1024),
    )(a_t, x_t, x_t, inv_deg, *small_operands)


# ---------------------------------------------------------------------------
# Host-side prep
# ---------------------------------------------------------------------------
def _round_up(n, m):
    return ((n + m - 1) // m) * m


def _choose_tiles(n_pad):
    """tile_k (reduction, 'arbitrary'): as large as divides n_pad.
    tile_i (node rows, 'parallel'): modest, keep i-tile count >=2 and even
    where possible for v7x megacore balance."""
    tile_k = 128
    for t in (1024, 512, 256):
        if n_pad % t == 0:
            tile_k = t
            break
    if n_pad % 256 == 0 and (n_pad // 256) >= 2 and (n_pad // 256) % 2 == 0:
        tile_i = 256
    else:
        tile_i = 128
    return tile_i, tile_k


def build_adjacency(edge_index, n_pad):
    """A^T as an int8 edge-multiplicity mask (n_pad, n_pad): entry [s, d] is
    the number of s->d edges.  Normalisation (1/deg_in per destination) is
    returned separately in exact f32 and applied in-kernel at finalize.
    Isolated / padded nodes get inv_deg = 0 (mean over nothing -> 0), matching
    PyG SAGEConv mean aggregation.  No dense f32 N^2 intermediate is built.
    (int8 assumes per-pair edge multiplicity < 128.)"""
    src, dst = edge_index[0], edge_index[1]
    a_t = jnp.zeros((n_pad, n_pad), jnp.int8).at[src, dst].add(jnp.int8(1))
    deg = jnp.zeros((n_pad,), jnp.float32).at[dst].add(1.0)
    inv_deg = jnp.where(deg > 0, 1.0 / jnp.maximum(deg, 1.0), 0.0)
    return a_t, inv_deg.reshape(1, n_pad)


@functools.partial(jax.jit, static_argnames=("compute_dtype",))
def item_gnn_encoder(x, edge_index, params, *, compute_dtype=jnp.bfloat16):
    n, f_in = x.shape
    w1l, w1r, b1, w2l, w2r, b2, wlin, blin = params
    hidden = w1l.shape[0]
    out_ch = wlin.shape[0]

    # Pad to a multiple of 128 (256 for larger graphs so tile_k can grow);
    # padding waste on the dominant A stream scales as (n_pad/n)^2.
    n_pad = _round_up(n, 128)
    if n_pad >= 2048 and n_pad % 256 != 0:
        n_pad = _round_up(n, 256)
    tile_i, tile_k = _choose_tiles(n_pad)

    # Transposed / padded features, 8-bit adjacency mask, exact f32 1/deg.
    a_t, inv_deg = build_adjacency(edge_index, n_pad)
    x_t = jnp.zeros((f_in, n_pad), compute_dtype).at[:, :n].set(
        x.T.astype(compute_dtype))

    cd = compute_dtype
    w1l_c, w1r_c = w1l.astype(cd), w1r.astype(cd)        # (H, F_in)
    w2l_c, w2r_c = w2l.astype(cd), w2r.astype(cd)        # (H, H)
    wlin_c = wlin.astype(cd)                             # (O, H)
    b1c = b1.reshape(-1, 1).astype(jnp.float32)
    b2c = b2.reshape(-1, 1).astype(jnp.float32)
    blc = blin.reshape(-1, 1).astype(jnp.float32)

    # Layer 1: SAGEConv + ReLU  ->  h1^T (H, n_pad) in compute dtype.
    h1_t = _run_layer(_sage_relu_kernel, a_t, x_t, inv_deg,
                      (w1l_c, w1r_c, b1c),
                      out_rows=hidden, out_dtype=cd,
                      tile_i=tile_i, tile_k=tile_k)
    # Layer 2: SAGEConv + ReLU + final Linear  ->  out^T (O, n_pad) in f32.
    out_t = _run_layer(_sage_relu_linear_kernel, a_t, h1_t, inv_deg,
                       (w2l_c, w2r_c, b2c, wlin_c, blc),
                       out_rows=out_ch, out_dtype=jnp.float32,
                       tile_i=tile_i, tile_k=tile_k)

    return out_t[:, :n].T


# ---------------------------------------------------------------------------
# Params / reference
# ---------------------------------------------------------------------------
def init_params(key, in_channels, hidden_channels, out_channels):
    ks = jax.random.split(key, 8)
    scale = 0.1
    w1l = scale * jax.random.normal(ks[0], (hidden_channels, in_channels), jnp.float32)
    w1r = scale * jax.random.normal(ks[1], (hidden_channels, in_channels), jnp.float32)
    b1 = scale * jax.random.normal(ks[2], (hidden_channels,), jnp.float32)
    w2l = scale * jax.random.normal(ks[3], (hidden_channels, hidden_channels), jnp.float32)
    w2r = scale * jax.random.normal(ks[4], (hidden_channels, hidden_channels), jnp.float32)
    b2 = scale * jax.random.normal(ks[5], (hidden_channels,), jnp.float32)
    wlin = scale * jax.random.normal(ks[6], (out_channels, hidden_channels), jnp.float32)
    blin = scale * jax.random.normal(ks[7], (out_channels,), jnp.float32)
    return (w1l, w1r, b1, w2l, w2r, b2, wlin, blin)


def reference(x, edge_index, params):
    """Pure f32 reference with PyG SAGEConv (mean aggregation) semantics."""
    n = x.shape[0]
    src, dst = edge_index[0], edge_index[1]
    a = jnp.zeros((n, n), jnp.float32).at[dst, src].add(1.0)   # A[d, s]
    deg = a.sum(axis=1, keepdims=True)
    a = jnp.where(deg > 0, a / jnp.maximum(deg, 1.0), 0.0)
    w1l, w1r, b1, w2l, w2r, b2, wlin, blin = params
    h1 = jnp.maximum((a @ x) @ w1l.T + x @ w1r.T + b1, 0.0)
    h2 = jnp.maximum((a @ h1) @ w2l.T + h1 @ w2r.T + b2, 0.0)
    return h2 @ wlin.T + blin


if __name__ == "__main__":
    key = jax.random.PRNGKey(0)
    k_x, k_e, k_p = jax.random.split(key, 3)

    num_nodes = 8
    in_channels = 16      # SAGEConv(-1, ...) is lazy; resolved from x here
    hidden_channels = 32
    out_channels = 8
    num_edges = 24

    x = jax.random.normal(k_x, (num_nodes, in_channels), jnp.float32)
    edge_index = jax.random.randint(k_e, (2, num_edges), 0, num_nodes, jnp.int32)
    params = init_params(k_p, in_channels, hidden_channels, out_channels)

    out = item_gnn_encoder(x, edge_index, params)
    out = jax.block_until_ready(out)

    ref = reference(x, edge_index, params)
    assert out.shape == (num_nodes, out_channels)
    # bf16 MXU inputs / f32 accumulation & exact f32 1/deg vs pure-f32 ref.
    assert jnp.allclose(out, ref, atol=5e-2, rtol=5e-2), \
        float(jnp.abs(out - ref).max())
    print("KERNEL_OK")
</pallas_src>

<mosaic_0001>
module attributes {stable_mosaic.version = 11 : i64} {
  func.func private @main(%arg0: i32) attributes {dimension_semantics = [#tpu.dimension_semantics<core_parallel>], iteration_bounds = array<i64: 2>, tpu.core_type = #tpu.core_type<sc_scalar_subcore>, window_params = []} {
    return
  }
}

module attributes {stable_mosaic.version = 11 : i64} {
  func.func private @main(%arg0: i32) attributes {dimension_semantics = [#tpu.dimension_semantics<core_parallel>], iteration_bounds = array<i64: 2>, tpu.core_type = #tpu.core_type<sc_scalar_subcore>, window_params = []} {
    return
  }
}

module attributes {stable_mosaic.version = 11 : i64} {
  func.func @_sage_relu_kernel(%arg0: i32, %arg1: i32, %arg2: memref<128x128xi8, #tpu.memory_space<vmem>>, %arg3: memref<16x128xbf16, #tpu.memory_space<vmem>>, %arg4: memref<16x128xbf16, #tpu.memory_space<vmem>>, %arg5: memref<1x128xf32, #tpu.memory_space<vmem>>, %arg6: memref<32x16xbf16, #tpu.memory_space<vmem>>, %arg7: memref<32x16xbf16, #tpu.memory_space<vmem>>, %arg8: memref<32x1xf32, #tpu.memory_space<vmem>>, %arg9: memref<32x128xbf16, #tpu.memory_space<vmem>>, %arg10: memref<16x128xf32, #tpu.memory_space<vmem>>) attributes {dimension_semantics = [#tpu.dimension_semantics<parallel>, #tpu.dimension_semantics<arbitrary>], iteration_bounds = array<i64: 1, 1>, scalar_prefetch = 0 : i64, scratch_operands = 1 : i64, tpu.core_type = #tpu.core_type<tc>, window_params = [{transform_indices = @transform_0, window_bounds = array<i64: 128, 128>}, {transform_indices = @transform_1, window_bounds = array<i64: 16, 128>}, {transform_indices = @transform_2, window_bounds = array<i64: 16, 128>}, {transform_indices = @transform_3, window_bounds = array<i64: 1, 128>}, {pipeline_mode = #tpu.pipeline_mode<synchronous>, transform_indices = @transform_4, window_bounds = array<i64: 32, 16>}, {pipeline_mode = #tpu.pipeline_mode<synchronous>, transform_indices = @transform_5, window_bounds = array<i64: 32, 16>}, {pipeline_mode = #tpu.pipeline_mode<synchronous>, transform_indices = @transform_6, window_bounds = array<i64: 32, 1>}, {transform_indices = @transform_7, window_bounds = array<i64: 32, 128>}]} {
    %c0_i32 = arith.constant 0 : i32
    %0 = arith.cmpi eq, %arg1, %c0_i32 : i32
    %1 = arith.extui %0 : i1 to i32
    %c0_i32_0 = arith.constant 0 : i32
    %2 = arith.cmpi ne, %1, %c0_i32_0 : i32
    scf.if %2 {
      %cst_10 = arith.constant 0.000000e+00 : f32
      %14 = vector.broadcast %cst_10 : f32 to vector<16x128xf32>
      %c0_11 = arith.constant 0 : index
      %c0_12 = arith.constant 0 : index
      %15 = vector.load %arg10[%c0_11, %c0_12] : memref<16x128xf32, #tpu.memory_space<vmem>>, vector<16x128xf32>
      tpu.vector_store %arg10[%c0_11, %c0_12], %14 {strides = array<i32>} : memref<16x128xf32, #tpu.memory_space<vmem>>, vector<16x128xf32>,
    } else {
    }
    %c0 = arith.constant 0 : index
    %c0_1 = arith.constant 0 : index
    %3 = vector.load %arg2[%c0, %c0_1] : memref<128x128xi8, #tpu.memory_space<vmem>>, vector<128x128xi8>
    %4 = arith.sitofp %3 : vector<128x128xi8> to vector<128x128xf32>
    %5 = arith.truncf %4 : vector<128x128xf32> to vector<128x128xbf16>
    %c0_2 = arith.constant 0 : index
    %c0_3 = arith.constant 0 : index
    %6 = vector.load %arg10[%c0_2, %c0_3] : memref<16x128xf32, #tpu.memory_space<vmem>>, vector<16x128xf32>
    %c0_4 = arith.constant 0 : index
    %c0_5 = arith.constant 0 : index
    %7 = vector.load %arg3[%c0_4, %c0_5] : memref<16x128xbf16, #tpu.memory_space<vmem>>, vector<16x128xbf16>
    %cst = arith.constant dense<0.000000e+00> : vector<16x128xf32>
    %8 = tpu.matmul %7, %5, %cst {dimension_numbers = #tpu.dot_dimension_numbers<[1], [0], [0], [1], [0, 0, 1, 1], [], []>} : vector<16x128xbf16>, vector<128x128xbf16>, vector<16x128xf32> -> vector<16x128xf32>
    %9 = arith.addf %6, %8 : vector<16x128xf32>
    %c0_6 = arith.constant 0 : index
    %c0_7 = arith.constant 0 : index
    %10 = vector.load %arg10[%c0_6, %c0_7] : memref<16x128xf32, #tpu.memory_space<vmem>>, vector<16x128xf32>
    tpu.vector_store %arg10[%c0_6, %c0_7], %9 {strides = array<i32>} : memref<16x128xf32, #tpu.memory_space<vmem>>, vector<16x128xf32>,
    %c0_i32_8 = arith.constant 0 : i32
    %11 = arith.cmpi eq, %arg1, %c0_i32_8 : i32
    %12 = arith.extui %11 : i1 to i32
    %c0_i32_9 = arith.constant 0 : i32
    %13 = arith.cmpi ne, %12, %c0_i32_9 : i32
    scf.if %13 {
      %c0_10 = arith.constant 0 : index
      %c0_11 = arith.constant 0 : index
      %14 = vector.load %arg10[%c0_10, %c0_11] : memref<16x128xf32, #tpu.memory_space<vmem>>, vector<16x128xf32>
      %c0_12 = arith.constant 0 : index
      %c0_13 = arith.constant 0 : index
      %15 = vector.load %arg5[%c0_12, %c0_13] : memref<1x128xf32, #tpu.memory_space<vmem>>, vector<1x128xf32>
      %16 = vector.broadcast %15 : vector<1x128xf32> to vector<16x128xf32>
      %17 = arith.mulf %14, %16 : vector<16x128xf32>
      %c0_14 = arith.constant 0 : index
      %c0_15 = arith.constant 0 : index
      %18 = vector.load %arg6[%c0_14, %c0_15] : memref<32x16xbf16, #tpu.memory_space<vmem>>, vector<32x16xbf16>
      %19 = arith.truncf %17 : vector<16x128xf32> to vector<16x128xbf16>
      %cst_16 = arith.constant dense<0.000000e+00> : vector<32x128xf32>
      %20 = tpu.matmul %18, %19, %cst_16 {dimension_numbers = #tpu.dot_dimension_numbers<[1], [0], [0], [1], [0, 0, 1, 1], [], []>} : vector<32x16xbf16>, vector<16x128xbf16>, vector<32x128xf32> -> vector<32x128xf32>
      %c0_17 = arith.constant 0 : index
      %c0_18 = arith.constant 0 : index
      %21 = vector.load %arg7[%c0_17, %c0_18] : memref<32x16xbf16, #tpu.memory_space<vmem>>, vector<32x16xbf16>
      %c0_19 = arith.constant 0 : index
      %c0_20 = arith.constant 0 : index
      %22 = vector.load %arg4[%c0_19, %c0_20] : memref<16x128xbf16, #tpu.memory_space<vmem>>, vector<16x128xbf16>
      %cst_21 = arith.constant dense<0.000000e+00> : vector<32x128xf32>
      %23 = tpu.matmul %21, %22, %cst_21 {dimension_numbers = #tpu.dot_dimension_numbers<[1], [0], [0], [1], [0, 0, 1, 1], [], []>} : vector<32x16xbf16>, vector<16x128xbf16>, vector<32x128xf32> -> vector<32x128xf32>
      %24 = arith.addf %20, %23 : vector<32x128xf32>
      %c0_22 = arith.constant 0 : index
      %c0_23 = arith.constant 0 : index
      %25 = vector.load %arg8[%c0_22, %c0_23] : memref<32x1xf32, #tpu.memory_space<vmem>>, vector<32x1xf32>
      %26 = vector.broadcast %25 : vector<32x1xf32> to vector<32x128xf32>
      %27 = arith.addf %24, %26 : vector<32x128xf32>
      %cst_24 = arith.constant 0.000000e+00 : f32
      %28 = vector.broadcast %cst_24 : f32 to vector<32x128xf32>
      %29 = arith.maximumf %27, %28 : vector<32x128xf32>
      %30 = arith.truncf %29 : vector<32x128xf32> to vector<32x128xbf16>
      %c0_25 = arith.constant 0 : index
      %c0_26 = arith.constant 0 : index
      %31 = vector.load %arg9[%c0_25, %c0_26] : memref<32x128xbf16, #tpu.memory_space<vmem>>, vector<32x128xbf16>
      tpu.vector_store %arg9[%c0_25, %c0_26], %30 {strides = array<i32>} : memref<32x128xbf16, #tpu.memory_space<vmem>>, vector<32x128xbf16>,
    } else {
    }
    return
  }
  func.func @transform_0(%arg0: i32, %arg1: i32) -> (i32, i32) {
    %c0_i32 = arith.constant 0 : i32
    return %arg1, %arg0 : i32, i32
  }
  func.func @transform_1(%arg0: i32, %arg1: i32) -> (i32, i32) {
    %c0_i32 = arith.constant 0 : i32
    %c0_i32_0 = arith.constant 0 : i32
    return %c0_i32, %arg1 : i32, i32
  }
  func.func @transform_2(%arg0: i32, %arg1: i32) -> (i32, i32) {
    %c0_i32 = arith.constant 0 : i32
    %c0_i32_0 = arith.constant 0 : i32
    return %c0_i32, %arg0 : i32, i32
  }
  func.func @transform_3(%arg0: i32, %arg1: i32) -> (i32, i32) {
    %c0_i32 = arith.constant 0 : i32
    %c0_i32_0 = arith.constant 0 : i32
    return %c0_i32, %arg0 : i32, i32
  }
  func.func @transform_4(%arg0: i32, %arg1: i32) -> (i32, i32) {
    %c0_i32 = arith.constant 0 : i32
    %c0_i32_0 = arith.constant 0 : i32
    %c0_i32_1 = arith.constant 0 : i32
    return %c0_i32, %c0_i32_0 : i32, i32
  }
  func.func @transform_5(%arg0: i32, %arg1: i32) -> (i32, i32) {
    %c0_i32 = arith.constant 0 : i32
    %c0_i32_0 = arith.constant 0 : i32
    %c0_i32_1 = arith.constant 0 : i32
    return %c0_i32, %c0_i32_0 : i32, i32
  }
  func.func @transform_6(%arg0: i32, %arg1: i32) -> (i32, i32) {
    %c0_i32 = arith.constant 0 : i32
    %c0_i32_0 = arith.constant 0 : i32
    %c0_i32_1 = arith.constant 0 : i32
    return %c0_i32, %c0_i32_0 : i32, i32
  }
  func.func @transform_7(%arg0: i32, %arg1: i32) -> (i32, i32) {
    %c0_i32 = arith.constant 0 : i32
    %c0_i32_0 = arith.constant 0 : i32
    return %c0_i32, %arg0 : i32, i32
  }
}

module attributes {stable_mosaic.version = 11 : i64} {
  func.func @_sage_relu_linear_kernel(%arg0: i32, %arg1: i32, %arg2: memref<128x128xi8, #tpu.memory_space<vmem>>, %arg3: memref<32x128xbf16, #tpu.memory_space<vmem>>, %arg4: memref<32x128xbf16, #tpu.memory_space<vmem>>, %arg5: memref<1x128xf32, #tpu.memory_space<vmem>>, %arg6: memref<32x32xbf16, #tpu.memory_space<vmem>>, %arg7: memref<32x32xbf16, #tpu.memory_space<vmem>>, %arg8: memref<32x1xf32, #tpu.memory_space<vmem>>, %arg9: memref<8x32xbf16, #tpu.memory_space<vmem>>, %arg10: memref<8x1xf32, #tpu.memory_space<vmem>>, %arg11: memref<8x128xf32, #tpu.memory_space<vmem>>, %arg12: memref<32x128xf32, #tpu.memory_space<vmem>>) attributes {dimension_semantics = [#tpu.dimension_semantics<parallel>, #tpu.dimension_semantics<arbitrary>], iteration_bounds = array<i64: 1, 1>, scalar_prefetch = 0 : i64, scratch_operands = 1 : i64, tpu.core_type = #tpu.core_type<tc>, window_params = [{transform_indices = @transform_0, window_bounds = array<i64: 128, 128>}, {transform_indices = @transform_1, window_bounds = array<i64: 32, 128>}, {transform_indices = @transform_2, window_bounds = array<i64: 32, 128>}, {transform_indices = @transform_3, window_bounds = array<i64: 1, 128>}, {pipeline_mode = #tpu.pipeline_mode<synchronous>, transform_indices = @transform_4, window_bounds = array<i64: 32, 32>}, {pipeline_mode = #tpu.pipeline_mode<synchronous>, transform_indices = @transform_5, window_bounds = array<i64: 32, 32>}, {pipeline_mode = #tpu.pipeline_mode<synchronous>, transform_indices = @transform_6, window_bounds = array<i64: 32, 1>}, {pipeline_mode = #tpu.pipeline_mode<synchronous>, transform_indices = @transform_7, window_bounds = array<i64: 8, 32>}, {pipeline_mode = #tpu.pipeline_mode<synchronous>, transform_indices = @transform_8, window_bounds = array<i64: 8, 1>}, {transform_indices = @transform_9, window_bounds = array<i64: 8, 128>}]} {
    %c0_i32 = arith.constant 0 : i32
    %0 = arith.cmpi eq, %arg1, %c0_i32 : i32
    %1 = arith.extui %0 : i1 to i32
    %c0_i32_0 = arith.constant 0 : i32
    %2 = arith.cmpi ne, %1, %c0_i32_0 : i32
    scf.if %2 {
      %cst_10 = arith.constant 0.000000e+00 : f32
      %14 = vector.broadcast %cst_10 : f32 to vector<32x128xf32>
      %c0_11 = arith.constant 0 : index
      %c0_12 = arith.constant 0 : index
      %15 = vector.load %arg12[%c0_11, %c0_12] : memref<32x128xf32, #tpu.memory_space<vmem>>, vector<32x128xf32>
      tpu.vector_store %arg12[%c0_11, %c0_12], %14 {strides = array<i32>} : memref<32x128xf32, #tpu.memory_space<vmem>>, vector<32x128xf32>,
    } else {
    }
    %c0 = arith.constant 0 : index
    %c0_1 = arith.constant 0 : index
    %3 = vector.load %arg2[%c0, %c0_1] : memref<128x128xi8, #tpu.memory_space<vmem>>, vector<128x128xi8>
    %4 = arith.sitofp %3 : vector<128x128xi8> to vector<128x128xf32>
    %5 = arith.truncf %4 : vector<128x128xf32> to vector<128x128xbf16>
    %c0_2 = arith.constant 0 : index
    %c0_3 = arith.constant 0 : index
    %6 = vector.load %arg12[%c0_2, %c0_3] : memref<32x128xf32, #tpu.memory_space<vmem>>, vector<32x128xf32>
    %c0_4 = arith.constant 0 : index
    %c0_5 = arith.constant 0 : index
    %7 = vector.load %arg3[%c0_4, %c0_5] : memref<32x128xbf16, #tpu.memory_space<vmem>>, vector<32x128xbf16>
    %cst = arith.constant dense<0.000000e+00> : vector<32x128xf32>
    %8 = tpu.matmul %7, %5, %cst {dimension_numbers = #tpu.dot_dimension_numbers<[1], [0], [0], [1], [0, 0, 1, 1], [], []>} : vector<32x128xbf16>, vector<128x128xbf16>, vector<32x128xf32> -> vector<32x128xf32>
    %9 = arith.addf %6, %8 : vector<32x128xf32>
    %c0_6 = arith.constant 0 : index
    %c0_7 = arith.constant 0 : index
    %10 = vector.load %arg12[%c0_6, %c0_7] : memref<32x128xf32, #tpu.memory_space<vmem>>, vector<32x128xf32>
    tpu.vector_store %arg12[%c0_6, %c0_7], %9 {strides = array<i32>} : memref<32x128xf32, #tpu.memory_space<vmem>>, vector<32x128xf32>,
    %c0_i32_8 = arith.constant 0 : i32
    %11 = arith.cmpi eq, %arg1, %c0_i32_8 : i32
    %12 = arith.extui %11 : i1 to i32
    %c0_i32_9 = arith.constant 0 : i32
    %13 = arith.cmpi ne, %12, %c0_i32_9 : i32
    scf.if %13 {
      %c0_10 = arith.constant 0 : index
      %c0_11 = arith.constant 0 : index
      %14 = vector.load %arg12[%c0_10, %c0_11] : memref<32x128xf32, #tpu.memory_space<vmem>>, vector<32x128xf32>
      %c0_12 = arith.constant 0 : index
      %c0_13 = arith.constant 0 : index
      %15 = vector.load %arg5[%c0_12, %c0_13] : memref<1x128xf32, #tpu.memory_space<vmem>>, vector<1x128xf32>
      %16 = vector.broadcast %15 : vector<1x128xf32> to vector<32x128xf32>
      %17 = arith.mulf %14, %16 : vector<32x128xf32>
      %c0_14 = arith.constant 0 : index
      %c0_15 = arith.constant 0 : index
      %18 = vector.load %arg6[%c0_14, %c0_15] : memref<32x32xbf16, #tpu.memory_space<vmem>>, vector<32x32xbf16>
      %19 = arith.truncf %17 : vector<32x128xf32> to vector<32x128xbf16>
      %cst_16 = arith.constant dense<0.000000e+00> : vector<32x128xf32>
      %20 = tpu.matmul %18, %19, %cst_16 {dimension_numbers = #tpu.dot_dimension_numbers<[1], [0], [0], [1], [0, 0, 1, 1], [], []>} : vector<32x32xbf16>, vector<32x128xbf16>, vector<32x128xf32> -> vector<32x128xf32>
      %c0_17 = arith.constant 0 : index
      %c0_18 = arith.constant 0 : index
      %21 = vector.load %arg7[%c0_17, %c0_18] : memref<32x32xbf16, #tpu.memory_space<vmem>>, vector<32x32xbf16>
      %c0_19 = arith.constant 0 : index
      %c0_20 = arith.constant 0 : index
      %22 = vector.load %arg4[%c0_19, %c0_20] : memref<32x128xbf16, #tpu.memory_space<vmem>>, vector<32x128xbf16>
      %cst_21 = arith.constant dense<0.000000e+00> : vector<32x128xf32>
      %23 = tpu.matmul %21, %22, %cst_21 {dimension_numbers = #tpu.dot_dimension_numbers<[1], [0], [0], [1], [0, 0, 1, 1], [], []>} : vector<32x32xbf16>, vector<32x128xbf16>, vector<32x128xf32> -> vector<32x128xf32>
      %24 = arith.addf %20, %23 : vector<32x128xf32>
      %c0_22 = arith.constant 0 : index
      %c0_23 = arith.constant 0 : index
      %25 = vector.load %arg8[%c0_22, %c0_23] : memref<32x1xf32, #tpu.memory_space<vmem>>, vector<32x1xf32>
      %26 = vector.broadcast %25 : vector<32x1xf32> to vector<32x128xf32>
      %27 = arith.addf %24, %26 : vector<32x128xf32>
      %cst_24 = arith.constant 0.000000e+00 : f32
      %28 = vector.broadcast %cst_24 : f32 to vector<32x128xf32>
      %29 = arith.maximumf %27, %28 : vector<32x128xf32>
      %c0_25 = arith.constant 0 : index
      %c0_26 = arith.constant 0 : index
      %30 = vector.load %arg9[%c0_25, %c0_26] : memref<8x32xbf16, #tpu.memory_space<vmem>>, vector<8x32xbf16>
      %31 = arith.truncf %29 : vector<32x128xf32> to vector<32x128xbf16>
      %cst_27 = arith.constant dense<0.000000e+00> : vector<8x128xf32>
      %32 = tpu.matmul %30, %31, %cst_27 {dimension_numbers = #tpu.dot_dimension_numbers<[1], [0], [0], [1], [0, 0, 1, 1], [], []>} : vector<8x32xbf16>, vector<32x128xbf16>, vector<8x128xf32> -> vector<8x128xf32>
      %c0_28 = arith.constant 0 : index
      %c0_29 = arith.constant 0 : index
      %33 = vector.load %arg10[%c0_28, %c0_29] : memref<8x1xf32, #tpu.memory_space<vmem>>, vector<8x1xf32>
      %34 = vector.broadcast %33 : vector<8x1xf32> to vector<8x128xf32>
      %35 = arith.addf %32, %34 : vector<8x128xf32>
      %c0_30 = arith.constant 0 : index
      %c0_31 = arith.constant 0 : index
      %36 = vector.load %arg11[%c0_30, %c0_31] : memref<8x128xf32, #tpu.memory_space<vmem>>, vector<8x128xf32>
      tpu.vector_store %arg11[%c0_30, %c0_31], %35 {strides = array<i32>} : memref<8x128xf32, #tpu.memory_space<vmem>>, vector<8x128xf32>,
    } else {
    }
    return
  }
  func.func @transform_0(%arg0: i32, %arg1: i32) -> (i32, i32) {
    %c0_i32 = arith.constant 0 : i32
    return %arg1, %arg0 : i32, i32
  }
  func.func @transform_1(%arg0: i32, %arg1: i32) -> (i32, i32) {
    %c0_i32 = arith.constant 0 : i32
    %c0_i32_0 = arith.constant 0 : i32
    return %c0_i32, %arg1 : i32, i32
  }
  func.func @transform_2(%arg0: i32, %arg1: i32) -> (i32, i32) {
    %c0_i32 = arith.constant 0 : i32
    %c0_i32_0 = arith.constant 0 : i32
    return %c0_i32, %arg0 : i32, i32
  }
  func.func @transform_3(%arg0: i32, %arg1: i32) -> (i32, i32) {
    %c0_i32 = arith.constant 0 : i32
    %c0_i32_0 = arith.constant 0 : i32
    return %c0_i32, %arg0 : i32, i32
  }
  func.func @transform_4(%arg0: i32, %arg1: i32) -> (i32, i32) {
    %c0_i32 = arith.constant 0 : i32
    %c0_i32_0 = arith.constant 0 : i32
    %c0_i32_1 = arith.constant 0 : i32
    return %c0_i32, %c0_i32_0 : i32, i32
  }
  func.func @transform_5(%arg0: i32, %arg1: i32) -> (i32, i32) {
    %c0_i32 = arith.constant 0 : i32
    %c0_i32_0 = arith.constant 0 : i32
    %c0_i32_1 = arith.constant 0 : i32
    return %c0_i32, %c0_i32_0 : i32, i32
  }
  func.func @transform_6(%arg0: i32, %arg1: i32) -> (i32, i32) {
    %c0_i32 = arith.constant 0 : i32
    %c0_i32_0 = arith.constant 0 : i32
    %c0_i32_1 = arith.constant 0 : i32
    return %c0_i32, %c0_i32_0 : i32, i32
  }
  func.func @transform_7(%arg0: i32, %arg1: i32) -> (i32, i32) {
    %c0_i32 = arith.constant 0 : i32
    %c0_i32_0 = arith.constant 0 : i32
    %c0_i32_1 = arith.constant 0 : i32
    return %c0_i32, %c0_i32_0 : i32, i32
  }
  func.func @transform_8(%arg0: i32, %arg1: i32) -> (i32, i32) {
    %c0_i32 = arith.constant 0 : i32
    %c0_i32_0 = arith.constant 0 : i32
    %c0_i32_1 = arith.constant 0 : i32
    return %c0_i32, %c0_i32_0 : i32, i32
  }
  func.func @transform_9(%arg0: i32, %arg1: i32) -> (i32, i32) {
    %c0_i32 = arith.constant 0 : i32
    %c0_i32_0 = arith.constant 0 : i32
    return %c0_i32, %arg0 : i32, i32
  }
}

</mosaic_0001>

<llo_original>
// kernel: item_gnn_encoder.2
$region0: #{item_gnn_encoder.2}
  #allocation0 [shape = 'u32[]', space=smem, size = 0x4, offset = 0x4, fixed_abs, tag = 'smem constant byte address 0x4 - core index']
  #allocation1 [shape = 'u32[144,128]{1,0:T(1,128)}', space=vmem, size = 0x12000, scoped, tag = 'internal scratch']
  #allocation2 [shape = 'f32[16,128]{1,0:T(8,128)}', space=vmem, size = 0x2000, scoped, tag = 'scratch operand']
  %s0 = inlined_call_operand.vmem [shape: s8[128,128], index: 0, kind: input, shape index: {}]
  %s1 = inlined_call_operand.vmem [shape: bf16[16,128], index: 1, kind: input, shape index: {}, may-alias: {1,2}]
  %s2 = inlined_call_operand.vmem [shape: bf16[16,128], index: 2, kind: input, shape index: {}, may-alias: {1,2}]
  %s3 = inlined_call_operand.vmem [shape: f32[1,128], index: 3, kind: input, shape index: {}]
  %s4 = inlined_call_operand.vmem [shape: bf16[32,16], index: 4, kind: input, shape index: {}]
  %s5 = inlined_call_operand.vmem [shape: bf16[32,16], index: 5, kind: input, shape index: {}]
  %s6 = inlined_call_operand.vmem [shape: f32[32,1], index: 6, kind: input, shape index: {}]
  %s7 = inlined_call_operand.vmem [shape: bf16[32,128], index: 7, kind: output, shape index: {}]
  %s8 = sld [smem:[#allocation0]]
  $region46: #{item_gnn_encoder.2} parent=0
    _
  %s10 = ssub.s32 1, %s8
  %s11 = scalar_select 0, %s10, %s8
  // Predicated region
  $region2: #{item_gnn_encoder.2} parent=0 // pred_check
    _
  $region3: #{item_gnn_encoder.2} parent=0 // pred_check_branch
    %13 = sbr.rel (0) target = $region5
  $region4: #{item_gnn_encoder.2} parent=0 // pred_region
    _
  $region5: #{item_gnn_encoder.2} parent=0 // pred_fallthru
    _
  // Predicated region
  $region6: #{item_gnn_encoder.2} parent=0 // pred_check
    _
  $region7: #{item_gnn_encoder.2} parent=0 // pred_check_branch
    %15 = sbr.rel (0) target = $region9
  $region8: #{item_gnn_encoder.2} parent=0 // pred_region
    _
  $region9: #{item_gnn_encoder.2} parent=0 // pred_fallthru
    _
  // Predicated region
  $region10: #{item_gnn_encoder.2} parent=0 // pred_check
    _
  $region11: #{item_gnn_encoder.2} parent=0 // pred_check_branch
    %17 = sbr.rel (0) target = $region13
  $region12: #{item_gnn_encoder.2} parent=0 // pred_region
    _
  $region13: #{item_gnn_encoder.2} parent=0 // pred_fallthru
    _
  // Predicated region
  $region14: #{item_gnn_encoder.2} parent=0 // pred_check
    _
  $region15: #{item_gnn_encoder.2} parent=0 // pred_check_branch
    %19 = sbr.rel (0) target = $region17
  $region16: #{item_gnn_encoder.2} parent=0 // pred_region
    _
  $region17: #{item_gnn_encoder.2} parent=0 // pred_fallthru
    _
  // Predicated region
  $region18: #{item_gnn_encoder.2} parent=0 // pred_check
    _
  $region19: #{item_gnn_encoder.2} parent=0 // pred_check_branch
    %21 = sbr.rel (0) target = $region21
  $region20: #{item_gnn_encoder.2} parent=0 // pred_region
    _
  $region21: #{item_gnn_encoder.2} parent=0 // pred_fallthru
    _
  // Predicated region
  $region22: #{item_gnn_encoder.2} parent=0 // pred_check
    _
  $region23: #{item_gnn_encoder.2} parent=0 // pred_check_branch
    %23 = sbr.rel (0) target = $region25
  $region24: #{item_gnn_encoder.2} parent=0 // pred_region
    _
  $region25: #{item_gnn_encoder.2} parent=0 // pred_fallthru
    _
  // Predicated region
  $region26: #{item_gnn_encoder.2} parent=0 // pred_check
    _
  $region27: #{item_gnn_encoder.2} parent=0 // pred_check_branch
    %25 = sbr.rel (0) target = $region29
  $region28: #{item_gnn_encoder.2} parent=0 // pred_region
    _
  $region29: #{item_gnn_encoder.2} parent=0 // pred_fallthru
    _
  %p27 = scmp.eq.s32.totalorder 0, 0
  // Predicated region
  $region30: #{item_gnn_encoder.2} parent=0 // pred_check
    %p28 = pneg %p27
  $region31: #{item_gnn_encoder.2} parent=0 // pred_check_branch
    %30 = sbr.rel (%p28) target = $region33
  $region32: #{item_gnn_encoder.2} parent=0 // pred_region
    %31 = vst [vmem:[#allocation2] sm:$0xff] 0.0
    %32 = vst [vmem:[#allocation2 + $0x8] sm:$0xff] 0.0
  $region33: #{item_gnn_encoder.2} parent=0 // pred_fallthru
    _
  %v33 = vld [vmem:[%s0] sm:$0x3]
  %v34 = vld [vmem:[%s0 + $0x2] sm:$0x3]
  %v35 = vld [vmem:[%s0 + $0x4] sm:$0x3]
  %v36 = vld [vmem:[%s0 + $0x6] sm:$0x3]
  %v37 = vld [vmem:[%s0 + $0x8] sm:$0x3]
  %v38 = vld [vmem:[%s0 + $0xa] sm:$0x3]
  %v39 = vld [vmem:[%s0 + $0xc] sm:$0x3]
  %v40 = vld [vmem:[%s0 + $0xe] sm:$0x3]
  %v41 = vld [vmem:[%s0 + $0x10] sm:$0x3]
  %v42 = vld [vmem:[%s0 + $0x12] sm:$0x3]
  %v43 = vld [vmem:[%s0 + $0x14] sm:$0x3]
  %v44 = vld [vmem:[%s0 + $0x16] sm:$0x3]
  %v45 = vld [vmem:[%s0 + $0x18] sm:$0x3]
  %v46 = vld [vmem:[%s0 + $0x1a] sm:$0x3]
  %v47 = vld [vmem:[%s0 + $0x1c] sm:$0x3]
  %v48 = vld [vmem:[%s0 + $0x1e] sm:$0x3]
  %v49 = vunpack.c.l.s8.bf16 %v33
  %v50 = vunpack.c.l.s8.bf16 %v34
  %v51 = vunpack.c.l.s8.bf16 %v35
  %v52 = vunpack.c.l.s8.bf16 %v36
  %v53 = vunpack.c.l.s8.bf16 %v37
  %v54 = vunpack.c.l.s8.bf16 %v38
  %v55 = vunpack.c.l.s8.bf16 %v39
  %v56 = vunpack.c.l.s8.bf16 %v40
  %v57 = vunpack.c.l.s8.bf16 %v41
  %v58 = vunpack.c.l.s8.bf16 %v42
  %v59 = vunpack.c.l.s8.bf16 %v43
  %v60 = vunpack.c.l.s8.bf16 %v44
  %v61 = vunpack.c.l.s8.bf16 %v45
  %v62 = vunpack.c.l.s8.bf16 %v46
  %v63 = vunpack.c.l.s8.bf16 %v47
  %v64 = vunpack.c.l.s8.bf16 %v48
  %v65 = vld [vmem:[#allocation2] sm:$0xff]
  %v66 = vld [vmem:[#allocation2 + $0x8] sm:$0xff]
  %v67 = vld [vmem:[%s1] sm:$0xf]
  %v68 = vld [vmem:[%s1 + $0x4] sm:$0xf]
  %v71 = vunpack.c.l.b16 %v67
  %v72 = vunpack.c.l.b16 %v68
  %v73 = vpack.c.b16 %v72, %v71
  %v91 = vunpack.c.l.b16 %v49
  %v92 = vunpack.c.l.b16 %v50
  %v93 = vunpack.c.l.b16 %v51
  %v94 = vunpack.c.l.b16 %v52
  %v95 = vunpack.c.l.b16 %v53
  %v96 = vunpack.c.l.b16 %v54
  %v97 = vunpack.c.l.b16 %v55
  %v98 = vunpack.c.l.b16 %v56
  %v99 = vunpack.c.l.b16 %v57
  %v100 = vunpack.c.l.b16 %v58
  %v101 = vunpack.c.l.b16 %v59
  %v102 = vunpack.c.l.b16 %v60
  %v103 = vunpack.c.l.b16 %v61
  %v104 = vunpack.c.l.b16 %v62
  %v105 = vunpack.c.l.b16 %v63
  %v106 = vunpack.c.l.b16 %v64
  %v107 = vpack.c.b16 %v92, %v91
  %v108 = vpack.c.b16 %v94, %v93
  %v109 = vpack.c.b16 %v96, %v95
  %v110 = vpack.c.b16 %v98, %v97
  %v111 = vpack.c.b16 %v100, %v99
  %v112 = vpack.c.b16 %v102, %v101
  %v113 = vpack.c.b16 %v104, %v103
  %v114 = vpack.c.b16 %v106, %v105
  %123 = vmatprep.subr.bf16.mxu0 0
  %124 = vmatpush1.bf16.msra.mxu0 %v114
  %125 = vmatprep.subr.bf16.mxu0 0
  %126 = vmatpush1.bf16.msra.mxu0 %v113
  %127 = vmatprep.subr.bf16.mxu0 0
  %128 = vmatpush1.bf16.msra.mxu0 %v112
  %129 = vmatprep.subr.bf16.mxu0 0
  %130 = vmatpush1.bf16.msra.mxu0 %v111
  %131 = vmatprep.subr.bf16.mxu0 0
  %132 = vmatpush1.bf16.msra.mxu0 %v110
  %133 = vmatprep.subr.bf16.mxu0 0
  %134 = vmatpush1.bf16.msra.mxu0 %v109
  %135 = vmatprep.subr.bf16.mxu0 0
  %136 = vmatpush1.bf16.msra.mxu0 %v108
  %137 = vmatprep.subr.bf16.mxu0 0
  %138 = vmatpush1.bf16.msra.mxu0 %v107
  %139 = vmatprep.subr.bf16.mxu0 0
  %140 = vmatpush2.bf16.msra.mxu0 0
  %141 = vmatprep.subr.bf16.mxu0 0
  %142 = vmatpush2.bf16.msra.mxu0 0
  %143 = vmatprep.subr.bf16.mxu0 0
  %144 = vmatpush2.bf16.msra.mxu0 0
  %145 = vmatprep.subr.bf16.mxu0 0
  %146 = vmatpush2.bf16.msra.mxu0 0
  %147 = vmatprep.subr.bf16.mxu0 0
  %148 = vmatpush2.bf16.msra.mxu0 0
  %149 = vmatprep.subr.bf16.mxu0 0
  %150 = vmatpush2.bf16.msra.mxu0 0
  %151 = vmatprep.subr.bf16.mxu0 0
  %152 = vmatpush2.bf16.msra.mxu0 0
  %153 = vmatprep.subr.bf16.mxu0 0
  %154 = vmatpush2.bf16.msra.mxu0 0
  %155 = vmatprep.mubr.bf16.mxu0 0
  %156 = vmatmul.mubr.bf16.gmra.mxu0 %v73
  %v157 = vpop.f32.mrf.mxu0
  %v158 = vadd.f32 0.0, %v157
  %v159 = vpop.f32.mrf.mxu0
  %v160 = vpop.f32.mrf.mxu0
  %v161 = vadd.f32 0.0, %v160
  %v162 = vpop.f32.mrf.mxu0
  %163 = vdwg.mxu0
  %v164 = vadd.f32 %v65, %v158
  %v165 = vadd.f32 %v66, %v161
  %166 = vst [vmem:[#allocation2] sm:$0xff] %v164
  %167 = vst [vmem:[#allocation2 + $0x8] sm:$0xff] %v165
  // Predicated region
  $region34: #{item_gnn_encoder.2} parent=0 // pred_check
    %p168 = pneg %p27
  $region35: #{item_gnn_encoder.2} parent=0 // pred_check_branch
    %170 = sbr.rel (%p168) target = $region37
  $region36: #{item_gnn_encoder.2} parent=0 // pred_region
    %v171 = vld [vmem:[#allocation2] sm:$0xff]
    %v172 = vld [vmem:[#allocation2 + $0x8] sm:$0xff]
    %v173 = vld [vmem:[%s3] sm:$0x1]
    %v175 = vlaneseq
    %v176 = vshrl.u32 %v175, 7
    %v177 = vsub.s32 0, %v176
    %v178 = vrot.slane %v173, %v177
    %v180 = vmul.f32 %v171, %v178
    %v181 = vmul.f32 %v172, %v178
    %v182 = vld [vmem:[%s4] sm:$0xf]
    %v183 = vld [vmem:[%s4 + $0x4] sm:$0xf]
    %v184 = vld [vmem:[%s4 + $0x8] sm:$0xf]
    %v185 = vld [vmem:[%s4 + $0xc] sm:$0xf]
    %v186 = vpack.c.bf16 %v181, %v180
    %v187 = vld [vmem:[%s5] sm:$0xf]
    %v188 = vld [vmem:[%s5 + $0x4] sm:$0xf]
    %v189 = vld [vmem:[%s5 + $0x8] sm:$0xf]
    %v190 = vld [vmem:[%s5 + $0xc] sm:$0xf]
    %v191 = vld [vmem:[%s2] sm:$0xf]
    %v192 = vld [vmem:[%s2 + $0x4] sm:$0xf]
    %v197 = vunpack.c.l.b16 %v187
    %v198 = vunpack.c.l.b16 %v188
    %v199 = vunpack.c.l.b16 %v189
    %v200 = vunpack.c.l.b16 %v190
    %v201 = vpack.c.b16 %v198, %v197
    %v202 = vpack.c.b16 %v200, %v199
    %v205 = vunpack.c.l.b16 %v191
    %v206 = vunpack.c.l.b16 %v192
    %v207 = vpack.c.b16 %v206, %v205
    %vm209 = vcmask 130048
    %v211 = vsel %vm209, %v201, 0
    %v214 = vsel %vm209, %v202, 0
    %216 = vmatprep.subr.bf16.mxu0 0
    %217 = vmatpush1.bf16.msra.mxu0 0
    %218 = vmatprep.subr.bf16.mxu0 0
    %219 = vmatpush1.bf16.msra.mxu0 0
    %220 = vmatprep.subr.bf16.mxu0 0
    %221 = vmatpush1.bf16.msra.mxu0 0
    %222 = vmatprep.subr.bf16.mxu0 0
    %223 = vmatpush1.bf16.msra.mxu0 0
    %224 = vmatprep.subr.bf16.mxu0 0
    %225 = vmatpush1.bf16.msra.mxu0 0
    %226 = vmatprep.subr.bf16.mxu0 0
    %227 = vmatpush1.bf16.msra.mxu0 0
    %228 = vmatprep.subr.bf16.mxu0 0
    %229 = vmatpush1.bf16.msra.mxu0 0
    %230 = vmatprep.subr.bf16.mxu0 0
    %231 = vmatpush1.bf16.msra.mxu0 %v207
    %232 = vmatprep.subr.bf16.mxu0 0
    %233 = vmatpush2.bf16.msra.mxu0 0
    %234 = vmatprep.subr.bf16.mxu0 0
    %235 = vmatpush2.bf16.msra.mxu0 0
    %236 = vmatprep.subr.bf16.mxu0 0
    %237 = vmatpush2.bf16.msra.mxu0 0
    %238 = vmatprep.subr.bf16.mxu0 0
    %239 = vmatpush2.bf16.msra.mxu0 0
    %240 = vmatprep.subr.bf16.mxu0 0
    %241 = vmatpush2.bf16.msra.mxu0 0
    %242 = vmatprep.subr.bf16.mxu0 0
    %243 = vmatpush2.bf16.msra.mxu0 0
    %244 = vmatprep.subr.bf16.mxu0 0
    %245 = vmatpush2.bf16.msra.mxu0 0
    %246 = vmatprep.subr.bf16.mxu0 0
    %247 = vmatpush2.bf16.msra.mxu0 0
    %248 = vmatprep.mubr.bf16.mxu0 0
    %249 = vmatmul.mubr.bf16.gmra.mxu0 %v211
    %v250 = vpop.f32.mrf.mxu0
    %v251 = vadd.f32 0.0, %v250
    %v252 = vpop.f32.mrf.mxu0
    %v253 = vpop.f32.mrf.mxu0
    %v254 = vadd.f32 0.0, %v253
    %v255 = vpop.f32.mrf.mxu0
    %256 = vmatprep.mubr.bf16.mxu0 0
    %257 = vmatmul.mubr.bf16.gmra.mxu0 %v214
    %v258 = vpop.f32.mrf.mxu0
    %v259 = vadd.f32 0.0, %v258
    %v260 = vpop.f32.mrf.mxu0
    %v261 = vpop.f32.mrf.mxu0
    %v262 = vadd.f32 0.0, %v261
    %v263 = vpop.f32.mrf.mxu0
    %264 = vdwg.mxu0
    %v269 = vunpack.c.l.b16 %v182
    %v270 = vunpack.c.l.b16 %v183
    %v271 = vunpack.c.l.b16 %v184
    %v272 = vunpack.c.l.b16 %v185
    %v273 = vpack.c.b16 %v270, %v269
    %v274 = vpack.c.b16 %v272, %v271
    %v276 = vsel %vm209, %v273, 0
    %v279 = vsel %vm209, %v274, 0
    %281 = vmatprep.subr.bf16.mxu0 0
    %282 = vmatpush1.bf16.msra.mxu0 0
    %283 = vmatprep.subr.bf16.mxu0 0
    %284 = vmatpush1.bf16.msra.mxu0 0
    %285 = vmatprep.subr.bf16.mxu0 0
    %286 = vmatpush1.bf16.msra.mxu0 0
    %287 = vmatprep.subr.bf16.mxu0 0
    %288 = vmatpush1.bf16.msra.mxu0 0
    %289 = vmatprep.subr.bf16.mxu0 0
    %290 = vmatpush1.bf16.msra.mxu0 0
    %291 = vmatprep.subr.bf16.mxu0 0
    %292 = vmatpush1.bf16.msra.mxu0 0
    %293 = vmatprep.subr.bf16.mxu0 0
    %294 = vmatpush1.bf16.msra.mxu0 0
    %295 = vmatprep.subr.bf16.mxu0 0
    %296 = vmatpush1.bf16.msra.mxu0 %v186
    %297 = vmatprep.subr.bf16.mxu0 0
    %298 = vmatpush2.bf16.msra.mxu0 0
    %299 = vmatprep.subr.bf16.mxu0 0
    %300 = vmatpush2.bf16.msra.mxu0 0
    %301 = vmatprep.subr.bf16.mxu0 0
    %302 = vmatpush2.bf16.msra.mxu0 0
    %303 = vmatprep.subr.bf16.mxu0 0
    %304 = vmatpush2.bf16.msra.mxu0 0
    %305 = vmatprep.subr.bf16.mxu0 0
    %306 = vmatpush2.bf16.msra.mxu0 0
    %307 = vmatprep.subr.bf16.mxu0 0
    %308 = vmatpush2.bf16.msra.mxu0 0
    %309 = vmatprep.subr.bf16.mxu0 0
    %310 = vmatpush2.bf16.msra.mxu0 0
    %311 = vmatprep.subr.bf16.mxu0 0
    %312 = vmatpush2.bf16.msra.mxu0 0
    %313 = vmatprep.mubr.bf16.mxu0 0
    %314 = vmatmul.mubr.bf16.gmra.mxu0 %v276
    %v315 = vpop.f32.mrf.mxu0
    %v316 = vadd.f32 %v251, %v315
    %v317 = vpop.f32.mrf.mxu0
    %v318 = vpop.f32.mrf.mxu0
    %v319 = vadd.f32 %v254, %v318
    %v320 = vpop.f32.mrf.mxu0
    %321 = vmatprep.mubr.bf16.mxu0 0
    %322 = vmatmul.mubr.bf16.gmra.mxu0 %v279
    %v323 = vpop.f32.mrf.mxu0
    %v324 = vadd.f32 %v259, %v323
    %v325 = vpop.f32.mrf.mxu0
    %v326 = vpop.f32.mrf.mxu0
    %v327 = vadd.f32 %v262, %v326
    %v328 = vpop.f32.mrf.mxu0
    %329 = vdwg.mxu0
    %v330 = vld [vmem:[%s6] sm:$0xff]
    %v331 = vld [vmem:[%s6 + $0x8] sm:$0xff]
    %v332 = vld [vmem:[%s6 + $0x10] sm:$0xff]
    %v333 = vld [vmem:[%s6 + $0x18] sm:$0xff]
    %335 = vset.pattern.permute.xlu0 0
    %336 = vperm.xlu0 %335, %v330
    %v337 = vpop.permute.xlu0 %336
    %340 = vset.pattern.permute.xlu0 0
    %341 = vperm.xlu0 %340, %v331
    %v342 = vpop.permute.xlu0 %341
    %345 = vset.pattern.permute.xlu0 0
    %346 = vperm.xlu0 %345, %v332
    %v347 = vpop.permute.xlu0 %346
    %350 = vset.pattern.permute.xlu0 0
    %351 = vperm.xlu0 %350, %v333
    %v352 = vpop.permute.xlu0 %351
    %v354 = vadd.f32 %v316, %v337
    %v355 = vadd.f32 %v319, %v342
    %v356 = vadd.f32 %v324, %v347
    %v357 = vadd.f32 %v327, %v352
    %v358 = vmax.f32 %v354, 0.0
    %v359 = vmax.f32 %v355, 0.0
    %v360 = vmax.f32 %v356, 0.0
    %v361 = vmax.f32 %v357, 0.0
    %v362 = vpack.c.bf16 %v359, %v358
    %v363 = vpack.c.bf16 %v361, %v360
    %v366 = vunpack.c.l.b16 %v362
    %v367 = vunpack.c.h.b16 %v362
    %v368 = vunpack.c.l.b16 %v363
    %v369 = vunpack.c.h.b16 %v363
    %v370 = vpack.c.b16 %v366, %v366
    %v371 = vpack.c.b16 %v367, %v367
    %v372 = vpack.c.b16 %v368, %v368
    %v373 = vpack.c.b16 %v369, %v369
    %378 = vst [vmem:[%s7] sm:$0xf] %v370
    %379 = vst [vmem:[%s7 + $0x4] sm:$0xf] %v371
    %380 = vst [vmem:[%s7 + $0x8] sm:$0xf] %v372
    %381 = vst [vmem:[%s7 + $0xc] sm:$0xf] %v373
  $region37: #{item_gnn_encoder.2} parent=0 // pred_fallthru
    _
  // Predicated region
  $region38: #{item_gnn_encoder.2} parent=0 // pred_check
    _
  $region39: #{item_gnn_encoder.2} parent=0 // pred_check_branch
    %383 = sbr.rel (0) target = $region41
  $region40: #{item_gnn_encoder.2} parent=0 // pred_region
    _
  $region41: #{item_gnn_encoder.2} parent=0 // pred_fallthru
    _
  // Predicated region
  $region42: #{item_gnn_encoder.2} parent=0 // pred_check
    _
  $region43: #{item_gnn_encoder.2} parent=0 // pred_check_branch
    %385 = sbr.rel (0) target = $region45
  $region44: #{item_gnn_encoder.2} parent=0 // pred_region
    _
  $region45: #{item_gnn_encoder.2} parent=0 // pred_fallthru
    _

// kernel: item_gnn_encoder.3
$region0: #{item_gnn_encoder.3}
  #allocation0 [shape = 'u32[]', space=smem, size = 0x4, offset = 0x4, fixed_abs, tag = 'smem constant byte address 0x4 - core index']
  #allocation1 [shape = 'u32[144,128]{1,0:T(1,128)}', space=vmem, size = 0x12000, scoped, tag = 'internal scratch']
  #allocation2 [shape = 'f32[32,128]{1,0:T(8,128)}', space=vmem, size = 0x4000, scoped, tag = 'scratch operand']
  %s0 = inlined_call_operand.vmem [shape: s8[128,128], index: 0, kind: input, shape index: {}]
  %s1 = inlined_call_operand.vmem [shape: bf16[32,128], index: 1, kind: input, shape index: {}, may-alias: {1,2}]
  %s2 = inlined_call_operand.vmem [shape: bf16[32,128], index: 2, kind: input, shape index: {}, may-alias: {1,2}]
  %s3 = inlined_call_operand.vmem [shape: f32[1,128], index: 3, kind: input, shape index: {}]
  %s4 = inlined_call_operand.vmem [shape: bf16[32,32], index: 4, kind: input, shape index: {}]
  %s5 = inlined_call_operand.vmem [shape: bf16[32,32], index: 5, kind: input, shape index: {}]
  %s6 = inlined_call_operand.vmem [shape: f32[32,1], index: 6, kind: input, shape index: {}]
  %s7 = inlined_call_operand.vmem [shape: bf16[8,32], index: 7, kind: input, shape index: {}]
  %s8 = inlined_call_operand.vmem [shape: f32[8,1], index: 8, kind: input, shape index: {}]
  %s9 = inlined_call_operand.vmem [shape: f32[8,128], index: 9, kind: output, shape index: {}]
  %s10 = sld [smem:[#allocation0]]
  $region54: #{item_gnn_encoder.3} parent=0
    _
  %s12 = ssub.s32 1, %s10
  %s13 = scalar_select 0, %s12, %s10
  // Predicated region
  $region2: #{item_gnn_encoder.3} parent=0 // pred_check
    _
  $region3: #{item_gnn_encoder.3} parent=0 // pred_check_branch
    %15 = sbr.rel (0) target = $region5
  $region4: #{item_gnn_encoder.3} parent=0 // pred_region
    _
  $region5: #{item_gnn_encoder.3} parent=0 // pred_fallthru
    _
  // Predicated region
  $region6: #{item_gnn_encoder.3} parent=0 // pred_check
    _
  $region7: #{item_gnn_encoder.3} parent=0 // pred_check_branch
    %17 = sbr.rel (0) target = $region9
  $region8: #{item_gnn_encoder.3} parent=0 // pred_region
    _
  $region9: #{item_gnn_encoder.3} parent=0 // pred_fallthru
    _
  // Predicated region
  $region10: #{item_gnn_encoder.3} parent=0 // pred_check
    _
  $region11: #{item_gnn_encoder.3} parent=0 // pred_check_branch
    %19 = sbr.rel (0) target = $region13
  $region12: #{item_gnn_encoder.3} parent=0 // pred_region
    _
  $region13: #{item_gnn_encoder.3} parent=0 // pred_fallthru
    _
  // Predicated region
  $region14: #{item_gnn_encoder.3} parent=0 // pred_check
    _
  $region15: #{item_gnn_encoder.3} parent=0 // pred_check_branch
    %21 = sbr.rel (0) target = $region17
  $region16: #{item_gnn_encoder.3} parent=0 // pred_region
    _
  $region17: #{item_gnn_encoder.3} parent=0 // pred_fallthru
    _
  // Predicated region
  $region18: #{item_gnn_encoder.3} parent=0 // pred_check
    _
  $region19: #{item_gnn_encoder.3} parent=0 // pred_check_branch
    %23 = sbr.rel (0) target = $region21
  $region20: #{item_gnn_encoder.3} parent=0 // pred_region
    _
  $region21: #{item_gnn_encoder.3} parent=0 // pred_fallthru
    _
  // Predicated region
  $region22: #{item_gnn_encoder.3} parent=0 // pred_check
    _
  $region23: #{item_gnn_encoder.3} parent=0 // pred_check_branch
    %25 = sbr.rel (0) target = $region25
  $region24: #{item_gnn_encoder.3} parent=0 // pred_region
    _
  $region25: #{item_gnn_encoder.3} parent=0 // pred_fallthru
    _
  // Predicated region
  $region26: #{item_gnn_encoder.3} parent=0 // pred_check
    _
  $region27: #{item_gnn_encoder.3} parent=0 // pred_check_branch
    %27 = sbr.rel (0) target = $region29
  $region28: #{item_gnn_encoder.3} parent=0 // pred_region
    _
  $region29: #{item_gnn_encoder.3} parent=0 // pred_fallthru
    _
  // Predicated region
  $region30: #{item_gnn_encoder.3} parent=0 // pred_check
    _
  $region31: #{item_gnn_encoder.3} parent=0 // pred_check_branch
    %29 = sbr.rel (0) target = $region33
  $region32: #{item_gnn_encoder.3} parent=0 // pred_region
    _
  $region33: #{item_gnn_encoder.3} parent=0 // pred_fallthru
    _
  // Predicated region
  $region34: #{item_gnn_encoder.3} parent=0 // pred_check
    _
  $region35: #{item_gnn_encoder.3} parent=0 // pred_check_branch
    %31 = sbr.rel (0) target = $region37
  $region36: #{item_gnn_encoder.3} parent=0 // pred_region
    _
  $region37: #{item_gnn_encoder.3} parent=0 // pred_fallthru
    _
  %p33 = scmp.eq.s32.totalorder 0, 0
  // Predicated region
  $region38: #{item_gnn_encoder.3} parent=0 // pred_check
    %p34 = pneg %p33
  $region39: #{item_gnn_encoder.3} parent=0 // pred_check_branch
    %36 = sbr.rel (%p34) target = $region41
  $region40: #{item_gnn_encoder.3} parent=0 // pred_region
    %37 = vst [vmem:[#allocation2] sm:$0xff] 0.0
    %38 = vst [vmem:[#allocation2 + $0x8] sm:$0xff] 0.0
    %39 = vst [vmem:[#allocation2 + $0x10] sm:$0xff] 0.0
    %40 = vst [vmem:[#allocation2 + $0x18] sm:$0xff] 0.0
  $region41: #{item_gnn_encoder.3} parent=0 // pred_fallthru
    _
  %v41 = vld [vmem:[%s0] sm:$0x3]
  %v42 = vld [vmem:[%s0 + $0x2] sm:$0x3]
  %v43 = vld [vmem:[%s0 + $0x4] sm:$0x3]
  %v44 = vld [vmem:[%s0 + $0x6] sm:$0x3]
  %v45 = vld [vmem:[%s0 + $0x8] sm:$0x3]
  %v46 = vld [vmem:[%s0 + $0xa] sm:$0x3]
  %v47 = vld [vmem:[%s0 + $0xc] sm:$0x3]
  %v48 = vld [vmem:[%s0 + $0xe] sm:$0x3]
  %v49 = vld [vmem:[%s0 + $0x10] sm:$0x3]
  %v50 = vld [vmem:[%s0 + $0x12] sm:$0x3]
  %v51 = vld [vmem:[%s0 + $0x14] sm:$0x3]
  %v52 = vld [vmem:[%s0 + $0x16] sm:$0x3]
  %v53 = vld [vmem:[%s0 + $0x18] sm:$0x3]
  %v54 = vld [vmem:[%s0 + $0x1a] sm:$0x3]
  %v55 = vld [vmem:[%s0 + $0x1c] sm:$0x3]
  %v56 = vld [vmem:[%s0 + $0x1e] sm:$0x3]
  %v57 = vunpack.c.l.s8.bf16 %v41
  %v58 = vunpack.c.l.s8.bf16 %v42
  %v59 = vunpack.c.l.s8.bf16 %v43
  %v60 = vunpack.c.l.s8.bf16 %v44
  %v61 = vunpack.c.l.s8.bf16 %v45
  %v62 = vunpack.c.l.s8.bf16 %v46
  %v63 = vunpack.c.l.s8.bf16 %v47
  %v64 = vunpack.c.l.s8.bf16 %v48
  %v65 = vunpack.c.l.s8.bf16 %v49
  %v66 = vunpack.c.l.s8.bf16 %v50
  %v67 = vunpack.c.l.s8.bf16 %v51
  %v68 = vunpack.c.l.s8.bf16 %v52
  %v69 = vunpack.c.l.s8.bf16 %v53
  %v70 = vunpack.c.l.s8.bf16 %v54
  %v71 = vunpack.c.l.s8.bf16 %v55
  %v72 = vunpack.c.l.s8.bf16 %v56
  %v73 = vld [vmem:[#allocation2] sm:$0xff]
  %v74 = vld [vmem:[#allocation2 + $0x8] sm:$0xff]
  %v75 = vld [vmem:[#allocation2 + $0x10] sm:$0xff]
  %v76 = vld [vmem:[#allocation2 + $0x18] sm:$0xff]
  %v77 = vld [vmem:[%s1] sm:$0xf]
  %v78 = vld [vmem:[%s1 + $0x4] sm:$0xf]
  %v79 = vld [vmem:[%s1 + $0x8] sm:$0xf]
  %v80 = vld [vmem:[%s1 + $0xc] sm:$0xf]
  %v85 = vunpack.c.l.b16 %v77
  %v86 = vunpack.c.l.b16 %v78
  %v87 = vunpack.c.l.b16 %v79
  %v88 = vunpack.c.l.b16 %v80
  %v89 = vpack.c.b16 %v86, %v85
  %v90 = vpack.c.b16 %v88, %v87
  %v109 = vunpack.c.l.b16 %v57
  %v110 = vunpack.c.l.b16 %v58
  %v111 = vunpack.c.l.b16 %v59
  %v112 = vunpack.c.l.b16 %v60
  %v113 = vunpack.c.l.b16 %v61
  %v114 = vunpack.c.l.b16 %v62
  %v115 = vunpack.c.l.b16 %v63
  %v116 = vunpack.c.l.b16 %v64
  %v117 = vunpack.c.l.b16 %v65
  %v118 = vunpack.c.l.b16 %v66
  %v119 = vunpack.c.l.b16 %v67
  %v120 = vunpack.c.l.b16 %v68
  %v121 = vunpack.c.l.b16 %v69
  %v122 = vunpack.c.l.b16 %v70
  %v123 = vunpack.c.l.b16 %v71
  %v124 = vunpack.c.l.b16 %v72
  %v125 = vpack.c.b16 %v110, %v109
  %v126 = vpack.c.b16 %v112, %v111
  %v127 = vpack.c.b16 %v114, %v113
  %v128 = vpack.c.b16 %v116, %v115
  %v129 = vpack.c.b16 %v118, %v117
  %v130 = vpack.c.b16 %v120, %v119
  %v131 = vpack.c.b16 %v122, %v121
  %v132 = vpack.c.b16 %v124, %v123
  %141 = vmatprep.subr.bf16.mxu0 0
  %142 = vmatpush1.bf16.msra.mxu0 %v132
  %143 = vmatprep.subr.bf16.mxu0 0
  %144 = vmatpush1.bf16.msra.mxu0 %v131
  %145 = vmatprep.subr.bf16.mxu0 0
  %146 = vmatpush1.bf16.msra.mxu0 %v130
  %147 = vmatprep.subr.bf16.mxu0 0
  %148 = vmatpush1.bf16.msra.mxu0 %v129
  %149 = vmatprep.subr.bf16.mxu0 0
  %150 = vmatpush1.bf16.msra.mxu0 %v128
  %151 = vmatprep.subr.bf16.mxu0 0
  %152 = vmatpush1.bf16.msra.mxu0 %v127
  %153 = vmatprep.subr.bf16.mxu0 0
  %154 = vmatpush1.bf16.msra.mxu0 %v126
  %155 = vmatprep.subr.bf16.mxu0 0
  %156 = vmatpush1.bf16.msra.mxu0 %v125
  %157 = vmatprep.subr.bf16.mxu0 0
  %158 = vmatpush2.bf16.msra.mxu0 0
  %159 = vmatprep.subr.bf16.mxu0 0
  %160 = vmatpush2.bf16.msra.mxu0 0
  %161 = vmatprep.subr.bf16.mxu0 0
  %162 = vmatpush2.bf16.msra.mxu0 0
  %163 = vmatprep.subr.bf16.mxu0 0
  %164 = vmatpush2.bf16.msra.mxu0 0
  %165 = vmatprep.subr.bf16.mxu0 0
  %166 = vmatpush2.bf16.msra.mxu0 0
  %167 = vmatprep.subr.bf16.mxu0 0
  %168 = vmatpush2.bf16.msra.mxu0 0
  %169 = vmatprep.subr.bf16.mxu0 0
  %170 = vmatpush2.bf16.msra.mxu0 0
  %171 = vmatprep.subr.bf16.mxu0 0
  %172 = vmatpush2.bf16.msra.mxu0 0
  %173 = vmatprep.mubr.bf16.mxu0 0
  %174 = vmatmul.mubr.bf16.gmra.mxu0 %v89
  %v175 = vpop.f32.mrf.mxu0
  %v176 = vadd.f32 0.0, %v175
  %v177 = vpop.f32.mrf.mxu0
  %v178 = vpop.f32.mrf.mxu0
  %v179 = vadd.f32 0.0, %v178
  %v180 = vpop.f32.mrf.mxu0
  %181 = vmatprep.mubr.bf16.mxu0 0
  %182 = vmatmul.mubr.bf16.gmra.mxu0 %v90
  %v183 = vpop.f32.mrf.mxu0
  %v184 = vadd.f32 0.0, %v183
  %v185 = vpop.f32.mrf.mxu0
  %v186 = vpop.f32.mrf.mxu0
  %v187 = vadd.f32 0.0, %v186
  %v188 = vpop.f32.mrf.mxu0
  %189 = vdwg.mxu0
  %v190 = vadd.f32 %v73, %v176
  %v191 = vadd.f32 %v74, %v179
  %v192 = vadd.f32 %v75, %v184
  %v193 = vadd.f32 %v76, %v187
  %194 = vst [vmem:[#allocation2] sm:$0xff] %v190
  %195 = vst [vmem:[#allocation2 + $0x8] sm:$0xff] %v191
  %196 = vst [vmem:[#allocation2 + $0x10] sm:$0xff] %v192
  %197 = vst [vmem:[#allocation2 + $0x18] sm:$0xff] %v193
  // Predicated region
  $region42: #{item_gnn_encoder.3} parent=0 // pred_check
    %p198 = pneg %p33
  $region43: #{item_gnn_encoder.3} parent=0 // pred_check_branch
    %200 = sbr.rel (%p198) target = $region45
  $region44: #{item_gnn_encoder.3} parent=0 // pred_region
    %v201 = vld [vmem:[#allocation2] sm:$0xff]
    %v202 = vld [vmem:[#allocation2 + $0x8] sm:$0xff]
    %v203 = vld [vmem:[#allocation2 + $0x10] sm:$0xff]
    %v204 = vld [vmem:[#allocation2 + $0x18] sm:$0xff]
    %v205 = vld [vmem:[%s3] sm:$0x1]
    %v207 = vlaneseq
    %v208 = vshrl.u32 %v207, 7
    %v209 = vsub.s32 0, %v208
    %v210 = vrot.slane %v205, %v209
    %v212 = vmul.f32 %v201, %v210
    %v213 = vmul.f32 %v202, %v210
    %v214 = vmul.f32 %v203, %v210
    %v215 = vmul.f32 %v204, %v210
    %v216 = vld [vmem:[%s4] sm:$0xf]
    %v217 = vld [vmem:[%s4 + $0x4] sm:$0xf]
    %v218 = vld [vmem:[%s4 + $0x8] sm:$0xf]
    %v219 = vld [vmem:[%s4 + $0xc] sm:$0xf]
    %v220 = vpack.c.bf16 %v213, %v212
    %v221 = vpack.c.bf16 %v215, %v214
    %v222 = vld [vmem:[%s5] sm:$0xf]
    %v223 = vld [vmem:[%s5 + $0x4] sm:$0xf]
    %v224 = vld [vmem:[%s5 + $0x8] sm:$0xf]
    %v225 = vld [vmem:[%s5 + $0xc] sm:$0xf]
    %v226 = vld [vmem:[%s2] sm:$0xf]
    %v227 = vld [vmem:[%s2 + $0x4] sm:$0xf]
    %v228 = vld [vmem:[%s2 + $0x8] sm:$0xf]
    %v229 = vld [vmem:[%s2 + $0xc] sm:$0xf]
    %v234 = vunpack.c.l.b16 %v222
    %v235 = vunpack.c.l.b16 %v223
    %v236 = vunpack.c.l.b16 %v224
    %v237 = vunpack.c.l.b16 %v225
    %v238 = vpack.c.b16 %v235, %v234
    %v239 = vpack.c.b16 %v237, %v236
    %v244 = vunpack.c.l.b16 %v226
    %v245 = vunpack.c.l.b16 %v227
    %v246 = vunpack.c.l.b16 %v228
    %v247 = vunpack.c.l.b16 %v229
    %v248 = vpack.c.b16 %v245, %v244
    %v249 = vpack.c.b16 %v247, %v246
    %vm252 = vcmask 261120
    %v254 = vsel %vm252, %v238, 0
    %v257 = vsel %vm252, %v239, 0
    %259 = vmatprep.subr.bf16.mxu0 0
    %260 = vmatpush1.bf16.msra.mxu0 0
    %261 = vmatprep.subr.bf16.mxu0 0
    %262 = vmatpush1.bf16.msra.mxu0 0
    %263 = vmatprep.subr.bf16.mxu0 0
    %264 = vmatpush1.bf16.msra.mxu0 0
    %265 = vmatprep.subr.bf16.mxu0 0
    %266 = vmatpush1.bf16.msra.mxu0 0
    %267 = vmatprep.subr.bf16.mxu0 0
    %268 = vmatpush1.bf16.msra.mxu0 0
    %269 = vmatprep.subr.bf16.mxu0 0
    %270 = vmatpush1.bf16.msra.mxu0 0
    %271 = vmatprep.subr.bf16.mxu0 0
    %272 = vmatpush1.bf16.msra.mxu0 %v249
    %273 = vmatprep.subr.bf16.mxu0 0
    %274 = vmatpush1.bf16.msra.mxu0 %v248
    %275 = vmatprep.subr.bf16.mxu0 0
    %276 = vmatpush2.bf16.msra.mxu0 0
    %277 = vmatprep.subr.bf16.mxu0 0
    %278 = vmatpush2.bf16.msra.mxu0 0
    %279 = vmatprep.subr.bf16.mxu0 0
    %280 = vmatpush2.bf16.msra.mxu0 0
    %281 = vmatprep.subr.bf16.mxu0 0
    %282 = vmatpush2.bf16.msra.mxu0 0
    %283 = vmatprep.subr.bf16.mxu0 0
    %284 = vmatpush2.bf16.msra.mxu0 0
    %285 = vmatprep.subr.bf16.mxu0 0
    %286 = vmatpush2.bf16.msra.mxu0 0
    %287 = vmatprep.subr.bf16.mxu0 0
    %288 = vmatpush2.bf16.msra.mxu0 0
    %289 = vmatprep.subr.bf16.mxu0 0
    %290 = vmatpush2.bf16.msra.mxu0 0
    %291 = vmatprep.mubr.bf16.mxu0 0
    %292 = vmatmul.mubr.bf16.gmra.mxu0 %v254
    %v293 = vpop.f32.mrf.mxu0
    %v294 = vadd.f32 0.0, %v293
    %v295 = vpop.f32.mrf.mxu0
    %v296 = vpop.f32.mrf.mxu0
    %v297 = vadd.f32 0.0, %v296
    %v298 = vpop.f32.mrf.mxu0
    %299 = vmatprep.mubr.bf16.mxu0 0
    %300 = vmatmul.mubr.bf16.gmra.mxu0 %v257
    %v301 = vpop.f32.mrf.mxu0
    %v302 = vadd.f32 0.0, %v301
    %v303 = vpop.f32.mrf.mxu0
    %v304 = vpop.f32.mrf.mxu0
    %v305 = vadd.f32 0.0, %v304
    %v306 = vpop.f32.mrf.mxu0
    %307 = vdwg.mxu0
    %v312 = vunpack.c.l.b16 %v216
    %v313 = vunpack.c.l.b16 %v217
    %v314 = vunpack.c.l.b16 %v218
    %v315 = vunpack.c.l.b16 %v219
    %v316 = vpack.c.b16 %v313, %v312
    %v317 = vpack.c.b16 %v315, %v314
    %v319 = vsel %vm252, %v316, 0
    %v322 = vsel %vm252, %v317, 0
    %324 = vmatprep.subr.bf16.mxu0 0
    %325 = vmatpush1.bf16.msra.mxu0 0
    %326 = vmatprep.subr.bf16.mxu0 0
    %327 = vmatpush1.bf16.msra.mxu0 0
    %328 = vmatprep.subr.bf16.mxu0 0
    %329 = vmatpush1.bf16.msra.mxu0 0
    %330 = vmatprep.subr.bf16.mxu0 0
    %331 = vmatpush1.bf16.msra.mxu0 0
    %332 = vmatprep.subr.bf16.mxu0 0
    %333 = vmatpush1.bf16.msra.mxu0 0
    %334 = vmatprep.subr.bf16.mxu0 0
    %335 = vmatpush1.bf16.msra.mxu0 0
    %336 = vmatprep.subr.bf16.mxu0 0
    %337 = vmatpush1.bf16.msra.mxu0 %v221
    %338 = vmatprep.subr.bf16.mxu0 0
    %339 = vmatpush1.bf16.msra.mxu0 %v220
    %340 = vmatprep.subr.bf16.mxu0 0
    %341 = vmatpush2.bf16.msra.mxu0 0
    %342 = vmatprep.subr.bf16.mxu0 0
    %343 = vmatpush2.bf16.msra.mxu0 0
    %344 = vmatprep.subr.bf16.mxu0 0
    %345 = vmatpush2.bf16.msra.mxu0 0
    %346 = vmatprep.subr.bf16.mxu0 0
    %347 = vmatpush2.bf16.msra.mxu0 0
    %348 = vmatprep.subr.bf16.mxu0 0
    %349 = vmatpush2.bf16.msra.mxu0 0
    %350 = vmatprep.subr.bf16.mxu0 0
    %351 = vmatpush2.bf16.msra.mxu0 0
    %352 = vmatprep.subr.bf16.mxu0 0
    %353 = vmatpush2.bf16.msra.mxu0 0
    %354 = vmatprep.subr.bf16.mxu0 0
    %355 = vmatpush2.bf16.msra.mxu0 0
    %356 = vmatprep.mubr.bf16.mxu0 0
    %357 = vmatmul.mubr.bf16.gmra.mxu0 %v319
    %v358 = vpop.f32.mrf.mxu0
    %v359 = vadd.f32 %v294, %v358
    %v360 = vpop.f32.mrf.mxu0
    %v361 = vpop.f32.mrf.mxu0
    %v362 = vadd.f32 %v297, %v361
    %v363 = vpop.f32.mrf.mxu0
    %364 = vmatprep.mubr.bf16.mxu0 0
    %365 = vmatmul.mubr.bf16.gmra.mxu0 %v322
    %v366 = vpop.f32.mrf.mxu0
    %v367 = vadd.f32 %v302, %v366
    %v368 = vpop.f32.mrf.mxu0
    %v369 = vpop.f32.mrf.mxu0
    %v370 = vadd.f32 %v305, %v369
    %v371 = vpop.f32.mrf.mxu0
    %372 = vdwg.mxu0
    %v373 = vld [vmem:[%s6] sm:$0xff]
    %v374 = vld [vmem:[%s6 + $0x8] sm:$0xff]
    %v375 = vld [vmem:[%s6 + $0x10] sm:$0xff]
    %v376 = vld [vmem:[%s6 + $0x18] sm:$0xff]
    %378 = vset.pattern.permute.xlu0 0
    %379 = vperm.xlu0 %378, %v373
    %v380 = vpop.permute.xlu0 %379
    %383 = vset.pattern.permute.xlu0 0
    %384 = vperm.xlu0 %383, %v374
    %v385 = vpop.permute.xlu0 %384
    %388 = vset.pattern.permute.xlu0 0
    %389 = vperm.xlu0 %388, %v375
    %v390 = vpop.permute.xlu0 %389
    %393 = vset.pattern.permute.xlu0 0
    %394 = vperm.xlu0 %393, %v376
    %v395 = vpop.permute.xlu0 %394
    %v397 = vadd.f32 %v359, %v380
    %v398 = vadd.f32 %v362, %v385
    %v399 = vadd.f32 %v367, %v390
    %v400 = vadd.f32 %v370, %v395
    %v401 = vmax.f32 %v397, 0.0
    %v402 = vmax.f32 %v398, 0.0
    %v403 = vmax.f32 %v399, 0.0
    %v404 = vmax.f32 %v400, 0.0
    %v405 = vld [vmem:[%s7] sm:$0xf]
    %v406 = vpack.c.bf16 %v402, %v401
    %v407 = vpack.c.bf16 %v404, %v403
    %v408 = vld [vmem:[%s8] sm:$0xff]
    %410 = vset.pattern.permute.xlu0 0
    %411 = vperm.xlu0 %410, %v408
    %v412 = vpop.permute.xlu0 %411
    %v415 = vsel %vm252, %v405, 0
    %417 = vmatprep.subr.bf16.mxu0 0
    %418 = vmatpush1.bf16.msra.mxu0 0
    %419 = vmatprep.subr.bf16.mxu0 0
    %420 = vmatpush1.bf16.msra.mxu0 0
    %421 = vmatprep.subr.bf16.mxu0 0
    %422 = vmatpush1.bf16.msra.mxu0 0
    %423 = vmatprep.subr.bf16.mxu0 0
    %424 = vmatpush1.bf16.msra.mxu0 0
    %425 = vmatprep.subr.bf16.mxu0 0
    %426 = vmatpush1.bf16.msra.mxu0 0
    %427 = vmatprep.subr.bf16.mxu0 0
    %428 = vmatpush1.bf16.msra.mxu0 0
    %429 = vmatprep.subr.bf16.mxu0 0
    %430 = vmatpush1.bf16.msra.mxu0 %v407
    %431 = vmatprep.subr.bf16.mxu0 0
    %432 = vmatpush1.bf16.msra.mxu0 %v406
    %433 = vmatprep.subr.bf16.mxu0 0
    %434 = vmatpush2.bf16.msra.mxu0 0
    %435 = vmatprep.subr.bf16.mxu0 0
    %436 = vmatpush2.bf16.msra.mxu0 0
    %437 = vmatprep.subr.bf16.mxu0 0
    %438 = vmatpush2.bf16.msra.mxu0 0
    %439 = vmatprep.subr.bf16.mxu0 0
    %440 = vmatpush2.bf16.msra.mxu0 0
    %441 = vmatprep.subr.bf16.mxu0 0
    %442 = vmatpush2.bf16.msra.mxu0 0
    %443 = vmatprep.subr.bf16.mxu0 0
    %444 = vmatpush2.bf16.msra.mxu0 0
    %445 = vmatprep.subr.bf16.mxu0 0
    %446 = vmatpush2.bf16.msra.mxu0 0
    %447 = vmatprep.subr.bf16.mxu0 0
    %448 = vmatpush2.bf16.msra.mxu0 0
    %449 = vmatprep.mubr.bf16.mxu0 0
    %450 = vmatmul.mubr.bf16.gmra.mxu0 %v415
    %v451 = vpop.f32.mrf.mxu0
    %v452 = vadd.f32 %v412, %v451
    %v453 = vpop.f32.mrf.mxu0
    %v454 = vpop.f32.mrf.mxu0
    %v455 = vpop.f32.mrf.mxu0
    %456 = vdwg.mxu0
    %457 = vst [vmem:[%s9] sm:$0xff] %v452
  $region45: #{item_gnn_encoder.3} parent=0 // pred_fallthru
    _
  // Predicated region
  $region46: #{item_gnn_encoder.3} parent=0 // pred_check
    _
  $region47: #{item_gnn_encoder.3} parent=0 // pred_check_branch
    %459 = sbr.rel (0) target = $region49
  $region48: #{item_gnn_encoder.3} parent=0 // pred_region
    _
  $region49: #{item_gnn_encoder.3} parent=0 // pred_fallthru
    _
  // Predicated region
  $region50: #{item_gnn_encoder.3} parent=0 // pred_check
    _
  $region51: #{item_gnn_encoder.3} parent=0 // pred_check_branch
    %461 = sbr.rel (0) target = $region53
  $region52: #{item_gnn_encoder.3} parent=0 // pred_region
    _
  $region53: #{item_gnn_encoder.3} parent=0 // pred_fallthru
    _

</llo_original>
